<compile_context>
chip_gen: v7x
topology: tpu7x:2x2x1
jax: 0.10.0
libtpu: 0.0.40
codegen_flags: <defaults>
</compile_context>

<pallas_src>
import math
from functools import partial

import jax
import jax.numpy as jnp
from jax.experimental import pallas as pl
from jax.experimental.pallas import tpu as pltpu

_LANE = 128
_SUBLANE = 8
# Per-step tile working-set budget: safe inside v5e's 16 MiB default scoped VMEM,
# comfortably inside v6e/v7x's 32 MiB defaults.
_VMEM_TILE_BUDGET = 12 * 1024 * 1024
# Explicit scoped-VMEM limit: <= physical VMEM on all of v5e/v6e (128 MiB), v7x (64 MiB).
_VMEM_LIMIT_BYTES = 32 * 1024 * 1024


def _round_up(x, m):
    return (x + m - 1) // m * m


# ----------------------------- Pallas kernel ---------------------------------
def _linear_clf_kernel(z_ref, wT_ref, b_ref, o_ref):
    # z_ref : (tile_m, D)     query-feature tile in VMEM (bf16)
    # wT_ref: (D, C_pad)      classifier weight, pre-transposed + lane-padded (bf16),
    #                         whole-array VMEM resident (single copy)
    # b_ref : (1, C_pad)      classifier bias, lane-padded, f32, VMEM resident
    # o_ref : (tile_m, C_pad) scores, lane-dense unmasked stores (bf16 out)
    acc = jnp.dot(z_ref[...], wT_ref[...], preferred_element_type=jnp.float32)
    o_ref[...] = (acc + b_ref[...]).astype(o_ref.dtype)


def _pick_tile_m(M, D, C_pad, z_itemsize, w_itemsize, out_itemsize):
    """Row tile: as large as the VMEM budget allows, 8-aligned, and split so that
    M > 64 always produces >= 2 grid steps (v7x megacore sharding of 'parallel')."""
    per_row = 2 * D * z_itemsize + 2 * C_pad * out_itemsize        # dbl-buffered z + out
    fixed = D * C_pad * w_itemsize + 2 * C_pad * 4                 # resident weight + bias
    cap = max(_SUBLANE, (_VMEM_TILE_BUDGET - fixed) // per_row)
    cap = min(cap, 512)
    if M > 64:
        # guarantee >=2 grid steps so the parallel axis can shard across 2 TCs (v7x)
        cap = min(cap, _round_up(pl.cdiv(M, 2), _SUBLANE))
    if M <= cap:
        return M                                   # one tile; block == full dim (any M legal)
    return max(_SUBLANE, (cap // _SUBLANE) * _SUBLANE)   # multi-tile: sublane aligned


def linear_classifier_scores(z_query, wT_padded, b_padded, n_classes):
    """scores = z_query @ W^T + b  (nn.Linear semantics), computed on the MXU.

    wT_padded: (D, C_pad) weight already transposed, zero-padded to a 128-lane
    multiple and stored in the compute dtype (bf16). Returns (M, n_classes).
    """
    M, D = z_query.shape
    Dw, C_pad = wT_padded.shape
    assert Dw == D and C_pad % _LANE == 0

    compute_dtype = wT_padded.dtype
    if z_query.dtype != compute_dtype:
        # Under jit this cast fuses with the upstream query slice/reshape (one HBM pass)
        # and halves the dominant HBM stream into the kernel.
        z_query = z_query.astype(compute_dtype)
    out_dtype = compute_dtype  # bf16 writeback; accumulation stays f32 in-kernel

    z_isz = jnp.dtype(compute_dtype).itemsize
    w_isz = jnp.dtype(wT_padded.dtype).itemsize
    b_isz = jnp.dtype(b_padded.dtype).itemsize
    out_isz = jnp.dtype(out_dtype).itemsize

    tile_m = _pick_tile_m(M, D, C_pad, z_isz, w_isz, out_isz)
    grid = (pl.cdiv(M, tile_m),)   # partial last block: OOB output rows are discarded

    cost = pl.CostEstimate(
        flops=2 * M * D * n_classes,          # real columns, not the zero-padded 128
        transcendentals=0,
        bytes_accessed=(M * D * z_isz
                        + D * C_pad * w_isz
                        + C_pad * b_isz
                        + M * C_pad * out_isz),
    )

    out = pl.pallas_call(
        _linear_clf_kernel,
        out_shape=jax.ShapeDtypeStruct((M, C_pad), out_dtype),
        grid_spec=pl.GridSpec(
            grid=grid,
            in_specs=[
                pl.BlockSpec((tile_m, D), lambda i: (i, 0)),          # z tile marches over M
                pl.BlockSpec(memory_space=pltpu.MemorySpace.VMEM),    # weight: single resident copy
                pl.BlockSpec(memory_space=pltpu.MemorySpace.VMEM),    # bias:   single resident copy
            ],
            out_specs=pl.BlockSpec((tile_m, C_pad), lambda i: (i, 0)),
        ),
        compiler_params=pltpu.CompilerParams(
            dimension_semantics=("parallel",),          # shard M across v7x's 2 TensorCores
            vmem_limit_bytes=_VMEM_LIMIT_BYTES,
        ),
        cost_estimate=cost,
    )(z_query, wT_padded, b_padded)

    # Padded-column slice only (no row slice needed); under jit this stays in-program.
    return out[:, :n_classes]


@partial(jax.jit, static_argnames=("n_support", "n_classes"))
def _episode_scores(x, wT_padded, b_padded, n_support, n_classes):
    # query slice -> flatten -> bf16 cast all fuse into the single pass feeding the kernel
    z_query = x[:, n_support:, :].reshape(-1, x.shape[-1])
    return linear_classifier_scores(z_query, wT_padded, b_padded, n_classes)


# ----------------------------- MetaTemplate ----------------------------------
class MetaTemplate:
    def __init__(self, n_way, n_support, feat_dim, change_way=True,
                 compute_dtype=jnp.bfloat16):
        self.n_way = n_way
        self.n_support = n_support
        self.n_query = -1
        self.feat_dim = feat_dim
        self.change_way = change_way
        self.compute_dtype = compute_dtype

        # Deterministic init of the adaptation linear classifier (nn.Linear(feat_dim, n_way)).
        kw, kb = jax.random.split(jax.random.PRNGKey(42))
        bound = 1.0 / math.sqrt(feat_dim)
        self.clf_w = jax.random.uniform(kw, (n_way, feat_dim), jnp.float32, -bound, bound)
        self.clf_b = jax.random.uniform(kb, (n_way,), jnp.float32, -bound, bound)

        # Pre-transpose + lane-pad + cast to the MXU compute dtype once at init
        # (no per-call transpose / pad / cast; halves the weight DMA vs f32).
        c_pad = _round_up(n_way, _LANE)
        self.c_pad = c_pad
        self.clf_wT_padded = (
            jnp.zeros((feat_dim, c_pad), compute_dtype)
            .at[:, :n_way].set(self.clf_w.T.astype(compute_dtype))
        )
        # Bias stays f32: it is added after the f32 accumulation and is tiny.
        self.clf_b_padded = (
            jnp.zeros((1, c_pad), jnp.float32).at[:, :n_way].set(self.clf_b)
        )

    def forward(self, x):
        # PyTorch reference: `def forward(self, x): pass`  -> returns None
        return None

    def parse_feature(self, x, is_feature=True):
        # is_feature=True path: x is already (n_way, n_support + n_query, feat_dim)
        assert is_feature, "only the is_feature=True path is implemented (no backbone given)"
        z_all = x
        z_support = z_all[:, : self.n_support]
        z_query = z_all[:, self.n_support:]
        return z_support, z_query

    def set_forward_adaptation(self, x, is_feature=True):
        assert is_feature, "Feature is fixed in further adaptation"
        # TODO(synk): the 100-epoch SGD fine-tuning of the classifier on z_support is a
        # host-side training loop (optimizer, RNG permutations, autograd) — skipped; the
        # classifier is deterministically initialized instead.
        # Note: the kernel handles arbitrary M, so many episodes' queries can be
        # concatenated along M into a single call to amortize launch overhead.
        return _episode_scores(
            x, self.clf_wT_padded, self.clf_b_padded, self.n_support, self.n_way
        )


# --------------------------------- main ---------------------------------------
if __name__ == "__main__":
    key = jax.random.PRNGKey(0)
    k1, k2 = jax.random.split(key)

    # --- case 1: small canonical episode (matches the PyTorch template usage) ---
    n_way, n_support, n_query, feat_dim = 4, 2, 3, 32
    x = jax.random.normal(k1, (n_way, n_support + n_query, feat_dim), jnp.float32)

    model = MetaTemplate(n_way=n_way, n_support=n_support, feat_dim=feat_dim)
    model.n_query = x.shape[1] - model.n_support
    if model.change_way:
        model.n_way = x.shape[0]

    scores = jax.block_until_ready(model.set_forward_adaptation(x, is_feature=True))
    assert scores.shape == (n_way * n_query, n_way)

    z_ref = x[:, n_support:].reshape(n_way * n_query, feat_dim)
    ref = z_ref @ model.clf_w.T + model.clf_b  # f32 reference
    err = float(jnp.max(jnp.abs(scores.astype(jnp.float32) - ref)))
    assert err < 5e-2, f"case1 mismatch vs reference: max err {err}"

    # --- case 2: larger "batched episodes" style case -> exercises grid > 1,
    #     a partial (OOB-clipped) last block, and non-128-multiple feat_dim. ---
    n_way2, n_support2, n_query2, feat_dim2 = 8, 5, 15, 200
    x2 = jax.random.normal(k2, (n_way2, n_support2 + n_query2, feat_dim2), jnp.float32)

    model2 = MetaTemplate(n_way=n_way2, n_support=n_support2, feat_dim=feat_dim2)
    model2.n_query = x2.shape[1] - model2.n_support
    if model2.change_way:
        model2.n_way = x2.shape[0]

    scores2 = jax.block_until_ready(model2.set_forward_adaptation(x2, is_feature=True))
    assert scores2.shape == (n_way2 * n_query2, n_way2)

    z_ref2 = x2[:, n_support2:].reshape(n_way2 * n_query2, feat_dim2)
    ref2 = z_ref2 @ model2.clf_w.T + model2.clf_b
    err2 = float(jnp.max(jnp.abs(scores2.astype(jnp.float32) - ref2)))
    assert err2 < 1e-1, f"case2 mismatch vs reference: max err {err2}"

    print("KERNEL_OK")
</pallas_src>

<mosaic_0001>
module attributes {stable_mosaic.version = 11 : i64} {
  func.func @_linear_clf_kernel(%arg0: i32, %arg1: memref<12x32xbf16, #tpu.memory_space<vmem>>, %arg2: memref<32x128xbf16, #tpu.memory_space<vmem>>, %arg3: memref<1x128xf32, #tpu.memory_space<vmem>>, %arg4: memref<12x128xbf16, #tpu.memory_space<vmem>>) attributes {dimension_semantics = [#tpu.dimension_semantics<parallel>], iteration_bounds = array<i64: 1>, scalar_prefetch = 0 : i64, scratch_operands = 0 : i64, tpu.core_type = #tpu.core_type<tc>, window_params = [{transform_indices = @transform_0, window_bounds = array<i64: 12, 32>}, {pipeline_mode = #tpu.pipeline_mode<synchronous>, transform_indices = @transform_1, window_bounds = array<i64: 32, 128>}, {pipeline_mode = #tpu.pipeline_mode<synchronous>, transform_indices = @transform_2, window_bounds = array<i64: 1, 128>}, {transform_indices = @transform_3, window_bounds = array<i64: 12, 128>}]} {
    %c0 = arith.constant 0 : index
    %c0_0 = arith.constant 0 : index
    %0 = vector.load %arg1[%c0, %c0_0] : memref<12x32xbf16, #tpu.memory_space<vmem>>, vector<12x32xbf16>
    %c0_1 = arith.constant 0 : index
    %c0_2 = arith.constant 0 : index
    %1 = vector.load %arg2[%c0_1, %c0_2] : memref<32x128xbf16, #tpu.memory_space<vmem>>, vector<32x128xbf16>
    %cst = arith.constant dense<0.000000e+00> : vector<12x128xf32>
    %2 = tpu.matmul %0, %1, %cst {dimension_numbers = #tpu.dot_dimension_numbers<[1], [0], [0], [1], [0, 0, 1, 1], [], []>} : vector<12x32xbf16>, vector<32x128xbf16>, vector<12x128xf32> -> vector<12x128xf32>
    %c0_3 = arith.constant 0 : index
    %c0_4 = arith.constant 0 : index
    %3 = vector.load %arg3[%c0_3, %c0_4] : memref<1x128xf32, #tpu.memory_space<vmem>>, vector<1x128xf32>
    %4 = vector.broadcast %3 : vector<1x128xf32> to vector<12x128xf32>
    %5 = arith.addf %2, %4 : vector<12x128xf32>
    %6 = arith.truncf %5 : vector<12x128xf32> to vector<12x128xbf16>
    %c0_5 = arith.constant 0 : index
    %c0_6 = arith.constant 0 : index
    %7 = vector.load %arg4[%c0_5, %c0_6] : memref<12x128xbf16, #tpu.memory_space<vmem>>, vector<12x128xbf16>
    tpu.vector_store %arg4[%c0_5, %c0_6], %6 {strides = array<i32>} : memref<12x128xbf16, #tpu.memory_space<vmem>>, vector<12x128xbf16>,
    return
  }
  func.func @transform_0(%arg0: i32) -> (i32, i32) {
    %c0_i32 = arith.constant 0 : i32
    %c0_i32_0 = arith.constant 0 : i32
    return %arg0, %c0_i32 : i32, i32
  }
  func.func @transform_1(%arg0: i32) -> (i32, i32) {
    %c0_i32 = arith.constant 0 : i32
    %c0_i32_0 = arith.constant 0 : i32
    %c0_i32_1 = arith.constant 0 : i32
    return %c0_i32, %c0_i32_0 : i32, i32
  }
  func.func @transform_2(%arg0: i32) -> (i32, i32) {
    %c0_i32 = arith.constant 0 : i32
    %c0_i32_0 = arith.constant 0 : i32
    %c0_i32_1 = arith.constant 0 : i32
    return %c0_i32, %c0_i32_0 : i32, i32
  }
  func.func @transform_3(%arg0: i32) -> (i32, i32) {
    %c0_i32 = arith.constant 0 : i32
    %c0_i32_0 = arith.constant 0 : i32
    return %arg0, %c0_i32 : i32, i32
  }
}

</mosaic_0001>

<llo_original>
// kernel: _episode_scores.1
$region0: #{_episode_scores.1}
  #allocation0 [shape = 'u32[]', space=smem, size = 0x4, offset = 0x4, fixed_abs, tag = 'smem constant byte address 0x4 - core index']
  #allocation1 [shape = 'u32[144,128]{1,0:T(1,128)}', space=vmem, size = 0x12000, scoped, tag = 'internal scratch']
  %s0 = inlined_call_operand.vmem [shape: bf16[12,32], index: 0, kind: input, shape index: {}]
  %s1 = inlined_call_operand.vmem [shape: bf16[32,128], index: 1, kind: input, shape index: {}]
  %s2 = inlined_call_operand.vmem [shape: f32[1,128], index: 2, kind: input, shape index: {}]
  %s3 = inlined_call_operand.vmem [shape: bf16[12,128], index: 3, kind: output, shape index: {}]
  %s4 = sld [smem:[#allocation0]]
  $region22: #{_episode_scores.1} parent=0
    _
  %s6 = ssub.s32 1, %s4
  %s7 = scalar_select 0, %s6, %s4
  // Predicated region
  $region2: #{_episode_scores.1} parent=0 // pred_check
    _
  $region3: #{_episode_scores.1} parent=0 // pred_check_branch
    %9 = sbr.rel (0) target = $region5
  $region4: #{_episode_scores.1} parent=0 // pred_region
    _
  $region5: #{_episode_scores.1} parent=0 // pred_fallthru
    _
  // Predicated region
  $region6: #{_episode_scores.1} parent=0 // pred_check
    _
  $region7: #{_episode_scores.1} parent=0 // pred_check_branch
    %11 = sbr.rel (0) target = $region9
  $region8: #{_episode_scores.1} parent=0 // pred_region
    _
  $region9: #{_episode_scores.1} parent=0 // pred_fallthru
    _
  // Predicated region
  $region10: #{_episode_scores.1} parent=0 // pred_check
    _
  $region11: #{_episode_scores.1} parent=0 // pred_check_branch
    %13 = sbr.rel (0) target = $region13
  $region12: #{_episode_scores.1} parent=0 // pred_region
    _
  $region13: #{_episode_scores.1} parent=0 // pred_fallthru
    _
  %v15 = vld [vmem:[%s0] sm:$0xf]
  %v16 = vld [vmem:[%s0 + $0x4] sm:$0x3]
  %v17 = vld [vmem:[%s1] sm:$0xf]
  %v18 = vld [vmem:[%s1 + $0x4] sm:$0xf]
  %v19 = vld [vmem:[%s1 + $0x8] sm:$0xf]
  %v20 = vld [vmem:[%s1 + $0xc] sm:$0xf]
  %v21 = vld [vmem:[%s2] sm:$0x1]
  %v23 = vlaneseq
  %v24 = vshrl.u32 %v23, 7
  %v25 = vsub.s32 0, %v24
  %v26 = vrot.slane %v21, %v25
  %v30 = vunpack.c.l.b16 %v15
  %v31 = vunpack.c.l.b16 %v16
  %v32 = vpack.c.b16 %v31, %v30
  %v37 = vunpack.c.l.b16 %v17
  %v38 = vunpack.c.l.b16 %v18
  %v39 = vunpack.c.l.b16 %v19
  %v40 = vunpack.c.l.b16 %v20
  %v41 = vpack.c.b16 %v38, %v37
  %v42 = vpack.c.b16 %v40, %v39
  %vm45 = vcmask 261120
  %v47 = vsel %vm45, %v32, 0
  %49 = vmatprep.subr.bf16.mxu0 0
  %50 = vmatpush1.bf16.msra.mxu0 %v41
  %51 = vmatprep.subr.bf16.mxu0 0
  %52 = vmatpush1.bf16.msra.mxu0 %v42
  %53 = vmatprep.subr.bf16.mxu0 0
  %54 = vmatpush1.bf16.msra.mxu0 0
  %55 = vmatprep.subr.bf16.mxu0 0
  %56 = vmatpush1.bf16.msra.mxu0 0
  %57 = vmatprep.subr.bf16.mxu0 0
  %58 = vmatpush1.bf16.msra.mxu0 0
  %59 = vmatprep.subr.bf16.mxu0 0
  %60 = vmatpush1.bf16.msra.mxu0 0
  %61 = vmatprep.subr.bf16.mxu0 0
  %62 = vmatpush1.bf16.msra.mxu0 0
  %63 = vmatprep.subr.bf16.mxu0 0
  %64 = vmatpush1.bf16.msra.mxu0 0
  %65 = vmatprep.subr.bf16.mxu0 0
  %66 = vmatpush1.bf16.msra.mxu0 0
  %67 = vmatprep.subr.bf16.mxu0 0
  %68 = vmatpush1.bf16.msra.mxu0 0
  %69 = vmatprep.subr.bf16.mxu0 0
  %70 = vmatpush1.bf16.msra.mxu0 0
  %71 = vmatprep.subr.bf16.mxu0 0
  %72 = vmatpush1.bf16.msra.mxu0 0
  %73 = vmatprep.subr.bf16.mxu0 0
  %74 = vmatpush1.bf16.msra.mxu0 0
  %75 = vmatprep.subr.bf16.mxu0 0
  %76 = vmatpush1.bf16.msra.mxu0 0
  %77 = vmatprep.subr.bf16.mxu0 0
  %78 = vmatpush1.bf16.msra.mxu0 0
  %79 = vmatprep.subr.bf16.mxu0 0
  %80 = vmatpush1.bf16.msra.mxu0 0
  %81 = vmatprep.mubr.bf16.mxu0 0
  %82 = vmatmul.mubr.bf16.gmra.mrb[0].mxu0 %v47
  %v83 = vpop.f32.mrb[0].mxu0
  %v84 = vadd.f32 %v26, %v83
  %v85 = vpop.f32.mrb[0].mxu0
  %v86 = vpop.f32.mrb[0].mxu0
  %v87 = vadd.f32 %v26, %v86
  %v88 = vpop.f32.mrb[0].mxu0
  %89 = vdwg.mxu0
  %v90 = vpack.c.bf16 %v87, %v84
  %v92 = vunpack.c.l.b16 %v90
  %v93 = vunpack.c.h.b16 %v90
  %v94 = vpack.c.b16 %v92, %v92
  %v95 = vpack.c.b16 %v93, %v93
  %98 = vst [vmem:[%s3] sm:$0xf] %v94
  %99 = vst [vmem:[%s3 + $0x4] sm:$0x3] %v95
  // Predicated region
  $region14: #{_episode_scores.1} parent=0 // pred_check
    _
  $region15: #{_episode_scores.1} parent=0 // pred_check_branch
    %101 = sbr.rel (0) target = $region17
  $region16: #{_episode_scores.1} parent=0 // pred_region
    _
  $region17: #{_episode_scores.1} parent=0 // pred_fallthru
    _
  // Predicated region
  $region18: #{_episode_scores.1} parent=0 // pred_check
    _
  $region19: #{_episode_scores.1} parent=0 // pred_check_branch
    %103 = sbr.rel (0) target = $region21
  $region20: #{_episode_scores.1} parent=0 // pred_region
    _
  $region21: #{_episode_scores.1} parent=0 // pred_fallthru
    _

</llo_original>
